<compile_context>
chip_gen: v7x
topology: tpu7x:2x2x1
jax: 0.10.0
libtpu: 0.0.40
codegen_flags: <defaults>
</compile_context>

<pallas_src>
import functools

import jax
import jax.numpy as jnp
from jax import lax
from jax.experimental import pallas as pl
from jax.experimental.pallas import tpu as pltpu


def _attention_kernel(x_ref, wq_ref, wk_ref, wv_ref, wproj_ref, bproj_ref,
                      hmask_ref, smask_ref, o_ref,
                      *, num_heads: int, apply_seq_mask: bool):
    """One block of batch_block sequences, flattened to M = batch_block * N rows.

    hmask_ref: (L, C) with L = H * M; row l = h*M + r is 1 on head-h channels, 0 elsewhere.
    smask_ref: (M, L) additive mask, 0 for same-sequence (query, key) pairs, -1e30 otherwise.
    """
    H = num_heads
    x = x_ref[...]                                                        # (M, C)

    # ---- Q/K/V projections: three full-width MXU GEMMs (w_q is pre-scaled) ----
    q = jnp.dot(x, wq_ref[...], preferred_element_type=jnp.float32)      # (M, C)
    k = jnp.dot(x, wk_ref[...], preferred_element_type=jnp.float32)      # (M, C)
    v = jnp.dot(x, wv_ref[...], preferred_element_type=jnp.float32)      # (M, C)

    # ---- Head-expanded K / V: row l = h*M + r keeps key-row r on head h's channels only ----
    hmask = hmask_ref[...]                                                # (L, C)
    k_exp = jnp.concatenate([k] * H, axis=0) * hmask                     # (L, C)
    v_exp = jnp.concatenate([v] * H, axis=0) * hmask                     # (L, C)

    # ---- Scores for all heads / all rows of the block in one MXU op ----
    # s[i, h*M + r] = <q_i, k_r> restricted to head h's channels.
    s = lax.dot_general(q, k_exp, (((1,), (1,)), ((), ())),
                        preferred_element_type=jnp.float32)               # (M, L)
    if apply_seq_mask:
        s = s + smask_ref[...]                                            # kill cross-sequence pairs

    # ---- Segmented softmax (per query row, per head) ----
    # Row max is constant within each head segment of the row, so subtracting it
    # leaves every per-head softmax unchanged; masked entries underflow to 0.
    # TODO(synk): switch to a per-head max if heads can have wildly different score ranges.
    s = s - jnp.max(s, axis=-1, keepdims=True)
    p = jnp.exp(s)                                                        # (M, L), unnormalized

    # attn @ v lands directly in (M, C) with the PyTorch channel order; the per-head
    # denominator lands on the same (M, C) grid via p @ head_mask (no (L, L) buffer).
    out_un = jnp.dot(p, v_exp, preferred_element_type=jnp.float32)        # (M, C)
    denom = jnp.dot(p, hmask, preferred_element_type=jnp.float32)         # (M, C)
    out = out_un / jnp.maximum(denom, 1e-30)                              # exact divide

    # ---- Output projection + bias ----
    y = jnp.dot(out, wproj_ref[...], preferred_element_type=jnp.float32) + bproj_ref[...]
    o_ref[...] = y.astype(o_ref.dtype)


def prepare_attention_params(w_qkv, w_proj, b_proj, *, num_heads: int):
    """One-time parameter transform: split QKV and fold the softmax scale into W_q."""
    C = w_qkv.shape[0]
    head_dim = C // num_heads
    scale = float(head_dim) ** -0.5
    w_q = w_qkv[:, :C] * scale
    w_k = w_qkv[:, C:2 * C]
    w_v = w_qkv[:, 2 * C:]
    return w_q, w_k, w_v, w_proj, b_proj.reshape(1, C)


def attention_pallas(x, w_q, w_k, w_v, w_proj, b_proj, *, num_heads: int,
                     batch_block=None):
    """x: (B, N, C) f32; w_q/w_k/w_v/w_proj: (C, C) (w_q pre-scaled); b_proj: (1, C)."""
    B, N, C = x.shape
    H = num_heads
    head_dim = C // H
    if batch_block is None:
        # Single TensorCore (v5e/v6e): collapse the grid (per-step overhead dominates
        # at small shapes).  On v7x pass batch_block = B // 2 so the two "parallel"
        # grid steps shard across the two TensorCores.
        batch_block = B
    assert B % batch_block == 0
    Mblk = batch_block * N
    L = H * Mblk

    x2 = x.reshape(B * N, C)   # flatten batch so the GEMMs see all rows of a block at once

    # ---- Static, grid-invariant masks (hoisted out of the kernel) ----
    head_of_row = jnp.arange(L, dtype=jnp.int32) // Mblk                  # head of expanded row l
    head_of_col = jnp.arange(C, dtype=jnp.int32) // head_dim              # head of channel c
    head_mask = (head_of_row[:, None] == head_of_col[None, :]).astype(jnp.float32)   # (L, C)

    q_seq = jnp.arange(Mblk, dtype=jnp.int32) // N
    k_seq = (jnp.arange(L, dtype=jnp.int32) % Mblk) // N
    seq_mask = jnp.where(q_seq[:, None] == k_seq[None, :], 0.0, -1e30).astype(jnp.float32)  # (M, L)

    kernel = functools.partial(_attention_kernel, num_heads=H,
                               apply_seq_mask=batch_block > 1)

    inv = lambda i: (0, 0)   # grid-invariant blocks (weights / masks)

    y2 = pl.pallas_call(
        kernel,
        out_shape=jax.ShapeDtypeStruct((B * N, C), x.dtype),
        grid_spec=pltpu.PrefetchScalarGridSpec(
            num_scalar_prefetch=0,
            grid=(B // batch_block,),
            in_specs=[
                pl.BlockSpec((Mblk, C), lambda i: (i, 0)),   # x rows of this block
                pl.BlockSpec((C, C), inv),                   # w_q (pre-scaled)
                pl.BlockSpec((C, C), inv),                   # w_k
                pl.BlockSpec((C, C), inv),                   # w_v
                pl.BlockSpec((C, C), inv),                   # w_proj
                pl.BlockSpec((1, C), inv),                   # b_proj
                pl.BlockSpec((L, C), inv),                   # head mask
                pl.BlockSpec((Mblk, L), inv),                # cross-sequence additive mask
            ],
            out_specs=pl.BlockSpec((Mblk, C), lambda i: (i, 0)),
        ),
        compiler_params=pltpu.CompilerParams(
            # With batch_block < B this shards grid steps across the 2 TCs on v7x.
            dimension_semantics=("parallel",)),
    )(x2, w_q, w_k, w_v, w_proj, b_proj, head_mask, seq_mask)
    return y2.reshape(B, N, C)


def attention_reference(x, w_qkv, w_proj, b_proj, *, num_heads: int):
    """Pure-JAX reference matching the PyTorch forward exactly (highest matmul precision)."""
    B, N, C = x.shape
    hd = C // num_heads
    scale = float(hd) ** -0.5
    hp = jax.lax.Precision.HIGHEST
    qkv = jnp.einsum("bnc,cd->bnd", x, w_qkv, precision=hp)
    qkv = qkv.reshape(B, N, 3, num_heads, hd).transpose(2, 0, 3, 1, 4)
    q, k, v = qkv[0], qkv[1], qkv[2]                                      # (B, H, N, hd)
    attn = jnp.einsum("bhqd,bhkd->bhqk", q, k, precision=hp) * scale      # (B, H, N, N)
    attn = jax.nn.softmax(attn, axis=-1)
    out = jnp.einsum("bhqk,bhkd->bhqd", attn, v, precision=hp)
    out = out.transpose(0, 2, 1, 3).reshape(B, N, C)
    return jnp.einsum("bnc,cd->bnd", out, w_proj, precision=hp) + b_proj.reshape(1, 1, C)


if __name__ == "__main__":
    # Small shapes consistent with the module: dim=C=32, num_heads=8, seq N=8, batch B=2.
    B, N, C = 2, 8, 32
    num_heads = 8

    key = jax.random.PRNGKey(0)
    kx, kq, kp, kb = jax.random.split(key, 4)

    x = jax.random.normal(kx, (B, N, C), dtype=jnp.float32)
    # Deterministic parameter init (stored as (in, out), i.e. W^T of nn.Linear).
    w_qkv = jax.random.normal(kq, (C, 3 * C), dtype=jnp.float32) * (C ** -0.5)
    w_proj = jax.random.normal(kp, (C, C), dtype=jnp.float32) * (C ** -0.5)
    b_proj = jax.random.normal(kb, (1, C), dtype=jnp.float32) * 0.02

    # One-time weight transform (split QKV, fold softmax scale into w_q).
    w_q, w_k, w_v, w_proj_p, b_proj_p = prepare_attention_params(
        w_qkv, w_proj, b_proj, num_heads=num_heads)

    out = attention_pallas(x, w_q, w_k, w_v, w_proj_p, b_proj_p, num_heads=num_heads)
    out = jax.block_until_ready(out)

    ref = attention_reference(x, w_qkv, w_proj, b_proj, num_heads=num_heads)
    assert out.shape == (B, N, C)
    assert jnp.allclose(out, ref, rtol=2e-3, atol=2e-3), "mismatch vs reference"

    print("KERNEL_OK")
</pallas_src>

<mosaic_0001>
module attributes {stable_mosaic.version = 11 : i64} {
  func.func @_attention_kernel(%arg0: i32, %arg1: memref<16x32xf32, #tpu.memory_space<vmem>>, %arg2: memref<32x32xf32, #tpu.memory_space<vmem>>, %arg3: memref<32x32xf32, #tpu.memory_space<vmem>>, %arg4: memref<32x32xf32, #tpu.memory_space<vmem>>, %arg5: memref<32x32xf32, #tpu.memory_space<vmem>>, %arg6: memref<1x32xf32, #tpu.memory_space<vmem>>, %arg7: memref<128x32xf32, #tpu.memory_space<vmem>>, %arg8: memref<16x128xf32, #tpu.memory_space<vmem>>, %arg9: memref<16x32xf32, #tpu.memory_space<vmem>>) attributes {dimension_semantics = [#tpu.dimension_semantics<parallel>], iteration_bounds = array<i64: 1>, scalar_prefetch = 0 : i64, scratch_operands = 0 : i64, tpu.core_type = #tpu.core_type<tc>, window_params = [{transform_indices = @transform_0, window_bounds = array<i64: 16, 32>}, {pipeline_mode = #tpu.pipeline_mode<synchronous>, transform_indices = @transform_1, window_bounds = array<i64: 32, 32>}, {pipeline_mode = #tpu.pipeline_mode<synchronous>, transform_indices = @transform_2, window_bounds = array<i64: 32, 32>}, {pipeline_mode = #tpu.pipeline_mode<synchronous>, transform_indices = @transform_3, window_bounds = array<i64: 32, 32>}, {pipeline_mode = #tpu.pipeline_mode<synchronous>, transform_indices = @transform_4, window_bounds = array<i64: 32, 32>}, {pipeline_mode = #tpu.pipeline_mode<synchronous>, transform_indices = @transform_5, window_bounds = array<i64: 1, 32>}, {pipeline_mode = #tpu.pipeline_mode<synchronous>, transform_indices = @transform_6, window_bounds = array<i64: 128, 32>}, {pipeline_mode = #tpu.pipeline_mode<synchronous>, transform_indices = @transform_7, window_bounds = array<i64: 16, 128>}, {transform_indices = @transform_8, window_bounds = array<i64: 16, 32>}]} {
    %c0 = arith.constant 0 : index
    %c0_0 = arith.constant 0 : index
    %0 = vector.load %arg1[%c0, %c0_0] : memref<16x32xf32, #tpu.memory_space<vmem>>, vector<16x32xf32>
    %c0_1 = arith.constant 0 : index
    %c0_2 = arith.constant 0 : index
    %1 = vector.load %arg2[%c0_1, %c0_2] : memref<32x32xf32, #tpu.memory_space<vmem>>, vector<32x32xf32>
    %cst = arith.constant dense<0.000000e+00> : vector<16x32xf32>
    %2 = tpu.matmul %0, %1, %cst {dimension_numbers = #tpu.dot_dimension_numbers<[1], [0], [0], [1], [0, 0, 1, 1], [], []>} : vector<16x32xf32>, vector<32x32xf32>, vector<16x32xf32> -> vector<16x32xf32>
    %c0_3 = arith.constant 0 : index
    %c0_4 = arith.constant 0 : index
    %3 = vector.load %arg3[%c0_3, %c0_4] : memref<32x32xf32, #tpu.memory_space<vmem>>, vector<32x32xf32>
    %cst_5 = arith.constant dense<0.000000e+00> : vector<16x32xf32>
    %4 = tpu.matmul %0, %3, %cst_5 {dimension_numbers = #tpu.dot_dimension_numbers<[1], [0], [0], [1], [0, 0, 1, 1], [], []>} : vector<16x32xf32>, vector<32x32xf32>, vector<16x32xf32> -> vector<16x32xf32>
    %c0_6 = arith.constant 0 : index
    %c0_7 = arith.constant 0 : index
    %5 = vector.load %arg4[%c0_6, %c0_7] : memref<32x32xf32, #tpu.memory_space<vmem>>, vector<32x32xf32>
    %cst_8 = arith.constant dense<0.000000e+00> : vector<16x32xf32>
    %6 = tpu.matmul %0, %5, %cst_8 {dimension_numbers = #tpu.dot_dimension_numbers<[1], [0], [0], [1], [0, 0, 1, 1], [], []>} : vector<16x32xf32>, vector<32x32xf32>, vector<16x32xf32> -> vector<16x32xf32>
    %c0_9 = arith.constant 0 : index
    %c0_10 = arith.constant 0 : index
    %7 = vector.load %arg7[%c0_9, %c0_10] : memref<128x32xf32, #tpu.memory_space<vmem>>, vector<128x32xf32>
    %8 = tpu.concatenate %4, %4, %4, %4, %4, %4, %4, %4 in 0 : vector<16x32xf32>, vector<16x32xf32>, vector<16x32xf32>, vector<16x32xf32>, vector<16x32xf32>, vector<16x32xf32>, vector<16x32xf32>, vector<16x32xf32> -> vector<128x32xf32>
    %9 = arith.mulf %8, %7 : vector<128x32xf32>
    %10 = tpu.concatenate %6, %6, %6, %6, %6, %6, %6, %6 in 0 : vector<16x32xf32>, vector<16x32xf32>, vector<16x32xf32>, vector<16x32xf32>, vector<16x32xf32>, vector<16x32xf32>, vector<16x32xf32>, vector<16x32xf32> -> vector<128x32xf32>
    %11 = arith.mulf %10, %7 : vector<128x32xf32>
    %cst_11 = arith.constant dense<0.000000e+00> : vector<16x128xf32>
    %12 = tpu.matmul %2, %9, %cst_11 {dimension_numbers = #tpu.dot_dimension_numbers<[1], [1], [0], [0], [0, 0, 1, 0], [], []>} : vector<16x32xf32>, vector<128x32xf32>, vector<16x128xf32> -> vector<16x128xf32>
    %c0_12 = arith.constant 0 : index
    %c0_13 = arith.constant 0 : index
    %13 = vector.load %arg8[%c0_12, %c0_13] : memref<16x128xf32, #tpu.memory_space<vmem>>, vector<16x128xf32>
    %14 = arith.addf %12, %13 : vector<16x128xf32>
    %cst_14 = arith.constant dense<0xFF800000> : vector<16xf32>
    %15 = vector.multi_reduction <maximumf>, %14, %cst_14 [1] : vector<16x128xf32> to vector<16xf32>
    %16 = vector.shape_cast %15 : vector<16xf32> to vector<16x1xf32>
    %17 = vector.broadcast %16 : vector<16x1xf32> to vector<16x128xf32>
    %18 = arith.subf %14, %17 : vector<16x128xf32>
    %19 = math.exp %18 : vector<16x128xf32>
    %cst_15 = arith.constant dense<0.000000e+00> : vector<16x32xf32>
    %20 = tpu.matmul %19, %11, %cst_15 {dimension_numbers = #tpu.dot_dimension_numbers<[1], [0], [0], [1], [0, 0, 1, 1], [], []>} : vector<16x128xf32>, vector<128x32xf32>, vector<16x32xf32> -> vector<16x32xf32>
    %cst_16 = arith.constant dense<0.000000e+00> : vector<16x32xf32>
    %21 = tpu.matmul %19, %7, %cst_16 {dimension_numbers = #tpu.dot_dimension_numbers<[1], [0], [0], [1], [0, 0, 1, 1], [], []>} : vector<16x128xf32>, vector<128x32xf32>, vector<16x32xf32> -> vector<16x32xf32>
    %cst_17 = arith.constant 1.000000e-30 : f32
    %22 = vector.broadcast %cst_17 : f32 to vector<16x32xf32>
    %23 = arith.maximumf %21, %22 : vector<16x32xf32>
    %24 = arith.divf %20, %23 : vector<16x32xf32>
    %c0_18 = arith.constant 0 : index
    %c0_19 = arith.constant 0 : index
    %25 = vector.load %arg5[%c0_18, %c0_19] : memref<32x32xf32, #tpu.memory_space<vmem>>, vector<32x32xf32>
    %cst_20 = arith.constant dense<0.000000e+00> : vector<16x32xf32>
    %26 = tpu.matmul %24, %25, %cst_20 {dimension_numbers = #tpu.dot_dimension_numbers<[1], [0], [0], [1], [0, 0, 1, 1], [], []>} : vector<16x32xf32>, vector<32x32xf32>, vector<16x32xf32> -> vector<16x32xf32>
    %c0_21 = arith.constant 0 : index
    %c0_22 = arith.constant 0 : index
    %27 = vector.load %arg6[%c0_21, %c0_22] : memref<1x32xf32, #tpu.memory_space<vmem>>, vector<1x32xf32>
    %28 = vector.broadcast %27 : vector<1x32xf32> to vector<16x32xf32>
    %29 = arith.addf %26, %28 : vector<16x32xf32>
    %c0_23 = arith.constant 0 : index
    %c0_24 = arith.constant 0 : index
    %30 = vector.load %arg9[%c0_23, %c0_24] : memref<16x32xf32, #tpu.memory_space<vmem>>, vector<16x32xf32>
    tpu.vector_store %arg9[%c0_23, %c0_24], %29 {strides = array<i32>} : memref<16x32xf32, #tpu.memory_space<vmem>>, vector<16x32xf32>,
    return
  }
  func.func @transform_0(%arg0: i32) -> (i32, i32) {
    %c0_i32 = arith.constant 0 : i32
    %c0_i32_0 = arith.constant 0 : i32
    return %arg0, %c0_i32 : i32, i32
  }
  func.func @transform_1(%arg0: i32) -> (i32, i32) {
    %c0_i32 = arith.constant 0 : i32
    %c0_i32_0 = arith.constant 0 : i32
    %c0_i32_1 = arith.constant 0 : i32
    return %c0_i32, %c0_i32_0 : i32, i32
  }
  func.func @transform_2(%arg0: i32) -> (i32, i32) {
    %c0_i32 = arith.constant 0 : i32
    %c0_i32_0 = arith.constant 0 : i32
    %c0_i32_1 = arith.constant 0 : i32
    return %c0_i32, %c0_i32_0 : i32, i32
  }
  func.func @transform_3(%arg0: i32) -> (i32, i32) {
    %c0_i32 = arith.constant 0 : i32
    %c0_i32_0 = arith.constant 0 : i32
    %c0_i32_1 = arith.constant 0 : i32
    return %c0_i32, %c0_i32_0 : i32, i32
  }
  func.func @transform_4(%arg0: i32) -> (i32, i32) {
    %c0_i32 = arith.constant 0 : i32
    %c0_i32_0 = arith.constant 0 : i32
    %c0_i32_1 = arith.constant 0 : i32
    return %c0_i32, %c0_i32_0 : i32, i32
  }
  func.func @transform_5(%arg0: i32) -> (i32, i32) {
    %c0_i32 = arith.constant 0 : i32
    %c0_i32_0 = arith.constant 0 : i32
    %c0_i32_1 = arith.constant 0 : i32
    return %c0_i32, %c0_i32_0 : i32, i32
  }
  func.func @transform_6(%arg0: i32) -> (i32, i32) {
    %c0_i32 = arith.constant 0 : i32
    %c0_i32_0 = arith.constant 0 : i32
    %c0_i32_1 = arith.constant 0 : i32
    return %c0_i32, %c0_i32_0 : i32, i32
  }
  func.func @transform_7(%arg0: i32) -> (i32, i32) {
    %c0_i32 = arith.constant 0 : i32
    %c0_i32_0 = arith.constant 0 : i32
    %c0_i32_1 = arith.constant 0 : i32
    return %c0_i32, %c0_i32_0 : i32, i32
  }
  func.func @transform_8(%arg0: i32) -> (i32, i32) {
    %c0_i32 = arith.constant 0 : i32
    %c0_i32_0 = arith.constant 0 : i32
    return %arg0, %c0_i32 : i32, i32
  }
}

</mosaic_0001>

<llo_original>
// kernel: tpu_custom_call.1
$region0: #{tpu_custom_call.1}
  #allocation0 [shape = 'u32[]', space=smem, size = 0x4, offset = 0x4, fixed_abs, tag = 'smem constant byte address 0x4 - core index']
  #allocation1 [shape = 'u32[144,128]{1,0:T(1,128)}', space=vmem, size = 0x12000, scoped, tag = 'internal scratch']
  %s0 = inlined_call_operand.vmem [shape: f32[16,32], index: 0, kind: input, shape index: {}]
  %s1 = inlined_call_operand.vmem [shape: f32[32,32], index: 1, kind: input, shape index: {}]
  %s2 = inlined_call_operand.vmem [shape: f32[32,32], index: 2, kind: input, shape index: {}]
  %s3 = inlined_call_operand.vmem [shape: f32[32,32], index: 3, kind: input, shape index: {}]
  %s4 = inlined_call_operand.vmem [shape: f32[32,32], index: 4, kind: input, shape index: {}]
  %s5 = inlined_call_operand.vmem [shape: f32[1,32], index: 5, kind: input, shape index: {}]
  %s6 = inlined_call_operand.vmem [shape: f32[128,32], index: 6, kind: input, shape index: {}]
  %s7 = inlined_call_operand.vmem [shape: f32[16,128], index: 7, kind: input, shape index: {}]
  %s8 = inlined_call_operand.hbm [shape: f32[16,32], index: 8, kind: output, shape index: {}]
  %s9 = sld [smem:[#allocation0]]
  $region42: #{tpu_custom_call.1} parent=0
    _
  %s11 = ssub.s32 1, %s9
  %s12 = scalar_select 0, %s11, %s9
  $region1: #{tpu_custom_call.1} parent=0
    #allocation2 [shape = 'u8[8192]{0}', space=vmem, size = 0x2000, scoped, tag = 'output window, operand 0, single buffered']
    #allocation3 [shape = 's32[1]{0}', space=sflag, size = 0x4, scoped, tag = 'scoped memory for tpu_custom_call.1']
    %13 = vsyncpa [#allocation3], 0
    // Predicated region
    $region2: #{tpu_custom_call.1} parent=1 // pred_check
      _
    $region3: #{tpu_custom_call.1} parent=1 // pred_check_branch
      %15 = sbr.rel (0) target = $region5
    $region4: #{tpu_custom_call.1} parent=1 // pred_region
      _
    $region5: #{tpu_custom_call.1} parent=1 // pred_fallthru
      _
    // Predicated region
    $region6: #{tpu_custom_call.1} parent=1 // pred_check
      _
    $region7: #{tpu_custom_call.1} parent=1 // pred_check_branch
      %17 = sbr.rel (0) target = $region9
    $region8: #{tpu_custom_call.1} parent=1 // pred_region
      _
    $region9: #{tpu_custom_call.1} parent=1 // pred_fallthru
      _
    // Predicated region
    $region10: #{tpu_custom_call.1} parent=1 // pred_check
      _
    $region11: #{tpu_custom_call.1} parent=1 // pred_check_branch
      %19 = sbr.rel (0) target = $region13
    $region12: #{tpu_custom_call.1} parent=1 // pred_region
      _
    $region13: #{tpu_custom_call.1} parent=1 // pred_fallthru
      _
    // Predicated region
    $region14: #{tpu_custom_call.1} parent=1 // pred_check
      _
    $region15: #{tpu_custom_call.1} parent=1 // pred_check_branch
      %21 = sbr.rel (0) target = $region17
    $region16: #{tpu_custom_call.1} parent=1 // pred_region
      _
    $region17: #{tpu_custom_call.1} parent=1 // pred_fallthru
      _
    // Predicated region
    $region18: #{tpu_custom_call.1} parent=1 // pred_check
      _
    $region19: #{tpu_custom_call.1} parent=1 // pred_check_branch
      %23 = sbr.rel (0) target = $region21
    $region20: #{tpu_custom_call.1} parent=1 // pred_region
      _
    $region21: #{tpu_custom_call.1} parent=1 // pred_fallthru
      _
    // Predicated region
    $region22: #{tpu_custom_call.1} parent=1 // pred_check
      _
    $region23: #{tpu_custom_call.1} parent=1 // pred_check_branch
      %25 = sbr.rel (0) target = $region25
    $region24: #{tpu_custom_call.1} parent=1 // pred_region
      _
    $region25: #{tpu_custom_call.1} parent=1 // pred_fallthru
      _
    // Predicated region
    $region26: #{tpu_custom_call.1} parent=1 // pred_check
      _
    $region27: #{tpu_custom_call.1} parent=1 // pred_check_branch
      %27 = sbr.rel (0) target = $region29
    $region28: #{tpu_custom_call.1} parent=1 // pred_region
      _
    $region29: #{tpu_custom_call.1} parent=1 // pred_fallthru
      _
    // Predicated region
    $region30: #{tpu_custom_call.1} parent=1 // pred_check
      _
    $region31: #{tpu_custom_call.1} parent=1 // pred_check_branch
      %29 = sbr.rel (0) target = $region33
    $region32: #{tpu_custom_call.1} parent=1 // pred_region
      _
    $region33: #{tpu_custom_call.1} parent=1 // pred_fallthru
      _
    %v30 = vld [vmem:[%s0] sm:$0xff]
    %v31 = vld [vmem:[%s0 + $0x8] sm:$0xff]
    %v32 = vld [vmem:[%s1] sm:$0xff]
    %v33 = vld [vmem:[%s1 + $0x8] sm:$0xff]
    %v34 = vld [vmem:[%s1 + $0x10] sm:$0xff]
    %v35 = vld [vmem:[%s1 + $0x18] sm:$0xff]
    %vm36 = vcmask 261120
    %v38 = vsel %vm36, %v30, 0
    %v41 = vsel %vm36, %v31, 0
    %43 = vmatprep.subr.mxu0 0.0
    %44 = vmatpush1.msra.mxu0 %v32
    %45 = vmatprep.subr.mxu0 0.0
    %46 = vmatpush1.msra.mxu0 %v33
    %47 = vmatprep.subr.mxu0 0.0
    %48 = vmatpush1.msra.mxu0 %v34
    %49 = vmatprep.subr.mxu0 0.0
    %50 = vmatpush1.msra.mxu0 %v35
    %51 = vmatprep.subr.mxu0 0.0
    %52 = vmatpush1.msra.mxu0 0.0
    %53 = vmatprep.subr.mxu0 0.0
    %54 = vmatpush1.msra.mxu0 0.0
    %55 = vmatprep.subr.mxu0 0.0
    %56 = vmatpush1.msra.mxu0 0.0
    %57 = vmatprep.subr.mxu0 0.0
    %58 = vmatpush1.msra.mxu0 0.0
    %59 = vmatprep.subr.mxu0 0.0
    %60 = vmatpush1.msra.mxu0 0.0
    %61 = vmatprep.subr.mxu0 0.0
    %62 = vmatpush1.msra.mxu0 0.0
    %63 = vmatprep.subr.mxu0 0.0
    %64 = vmatpush1.msra.mxu0 0.0
    %65 = vmatprep.subr.mxu0 0.0
    %66 = vmatpush1.msra.mxu0 0.0
    %67 = vmatprep.subr.mxu0 0.0
    %68 = vmatpush1.msra.mxu0 0.0
    %69 = vmatprep.subr.mxu0 0.0
    %70 = vmatpush1.msra.mxu0 0.0
    %71 = vmatprep.subr.mxu0 0.0
    %72 = vmatpush1.msra.mxu0 0.0
    %73 = vmatprep.subr.mxu0 0.0
    %74 = vmatpush1.msra.mxu0 0.0
    %75 = vmatprep.subr.mxu0 0.0
    %76 = vmatpush1.msra.mxu0 0.0
    %77 = vmatprep.subr.mxu0 0.0
    %78 = vmatpush1.msra.mxu0 0.0
    %79 = vmatprep.subr.mxu0 0.0
    %80 = vmatpush1.msra.mxu0 0.0
    %81 = vmatprep.subr.mxu0 0.0
    %82 = vmatpush1.msra.mxu0 0.0
    %83 = vmatprep.subr.mxu0 0.0
    %84 = vmatpush1.msra.mxu0 0.0
    %85 = vmatprep.subr.mxu0 0.0
    %86 = vmatpush1.msra.mxu0 0.0
    %87 = vmatprep.subr.mxu0 0.0
    %88 = vmatpush1.msra.mxu0 0.0
    %89 = vmatprep.subr.mxu0 0.0
    %90 = vmatpush1.msra.mxu0 0.0
    %91 = vmatprep.subr.mxu0 0.0
    %92 = vmatpush1.msra.mxu0 0.0
    %93 = vmatprep.subr.mxu0 0.0
    %94 = vmatpush1.msra.mxu0 0.0
    %95 = vmatprep.subr.mxu0 0.0
    %96 = vmatpush1.msra.mxu0 0.0
    %97 = vmatprep.subr.mxu0 0.0
    %98 = vmatpush1.msra.mxu0 0.0
    %99 = vmatprep.subr.mxu0 0.0
    %100 = vmatpush1.msra.mxu0 0.0
    %101 = vmatprep.subr.mxu0 0.0
    %102 = vmatpush1.msra.mxu0 0.0
    %103 = vmatprep.subr.mxu0 0.0
    %104 = vmatpush1.msra.mxu0 0.0
    %105 = vmatprep.subr.mxu0 0.0
    %106 = vmatpush1.msra.mxu0 0.0
    %107 = vmatprep.mubr.f32.mxu0 0.0
    %108 = vmatmul.mubr.f32.gmra.mrb[0].mxu0 %v38
    %v109 = vpop.f32.mrb[0].mxu0
    %v110 = vadd.f32 0.0, %v109
    %v111 = vpop.f32.mrb[0].mxu0
    %112 = vmatprep.mubr.f32.mxu0 0.0
    %113 = vmatmul.mubr.f32.gmra.mrb[0].mxu0 %v41
    %v114 = vpop.f32.mrb[0].mxu0
    %v115 = vadd.f32 0.0, %v114
    %v116 = vpop.f32.mrb[0].mxu0
    %117 = vdwg.mxu0
    %v118 = vld [vmem:[%s2] sm:$0xff]
    %v119 = vld [vmem:[%s2 + $0x8] sm:$0xff]
    %v120 = vld [vmem:[%s2 + $0x10] sm:$0xff]
    %v121 = vld [vmem:[%s2 + $0x18] sm:$0xff]
    %122 = vmatprep.subr.mxu0 0.0
    %123 = vmatpush1.msra.mxu0 %v118
    %124 = vmatprep.subr.mxu0 0.0
    %125 = vmatpush1.msra.mxu0 %v119
    %126 = vmatprep.subr.mxu0 0.0
    %127 = vmatpush1.msra.mxu0 %v120
    %128 = vmatprep.subr.mxu0 0.0
    %129 = vmatpush1.msra.mxu0 %v121
    %130 = vmatprep.subr.mxu0 0.0
    %131 = vmatpush1.msra.mxu0 0.0
    %132 = vmatprep.subr.mxu0 0.0
    %133 = vmatpush1.msra.mxu0 0.0
    %134 = vmatprep.subr.mxu0 0.0
    %135 = vmatpush1.msra.mxu0 0.0
    %136 = vmatprep.subr.mxu0 0.0
    %137 = vmatpush1.msra.mxu0 0.0
    %138 = vmatprep.subr.mxu0 0.0
    %139 = vmatpush1.msra.mxu0 0.0
    %140 = vmatprep.subr.mxu0 0.0
    %141 = vmatpush1.msra.mxu0 0.0
    %142 = vmatprep.subr.mxu0 0.0
    %143 = vmatpush1.msra.mxu0 0.0
    %144 = vmatprep.subr.mxu0 0.0
    %145 = vmatpush1.msra.mxu0 0.0
    %146 = vmatprep.subr.mxu0 0.0
    %147 = vmatpush1.msra.mxu0 0.0
    %148 = vmatprep.subr.mxu0 0.0
    %149 = vmatpush1.msra.mxu0 0.0
    %150 = vmatprep.subr.mxu0 0.0
    %151 = vmatpush1.msra.mxu0 0.0
    %152 = vmatprep.subr.mxu0 0.0
    %153 = vmatpush1.msra.mxu0 0.0
    %154 = vmatprep.subr.mxu0 0.0
    %155 = vmatpush1.msra.mxu0 0.0
    %156 = vmatprep.subr.mxu0 0.0
    %157 = vmatpush1.msra.mxu0 0.0
    %158 = vmatprep.subr.mxu0 0.0
    %159 = vmatpush1.msra.mxu0 0.0
    %160 = vmatprep.subr.mxu0 0.0
    %161 = vmatpush1.msra.mxu0 0.0
    %162 = vmatprep.subr.mxu0 0.0
    %163 = vmatpush1.msra.mxu0 0.0
    %164 = vmatprep.subr.mxu0 0.0
    %165 = vmatpush1.msra.mxu0 0.0
    %166 = vmatprep.subr.mxu0 0.0
    %167 = vmatpush1.msra.mxu0 0.0
    %168 = vmatprep.subr.mxu0 0.0
    %169 = vmatpush1.msra.mxu0 0.0
    %170 = vmatprep.subr.mxu0 0.0
    %171 = vmatpush1.msra.mxu0 0.0
    %172 = vmatprep.subr.mxu0 0.0
    %173 = vmatpush1.msra.mxu0 0.0
    %174 = vmatprep.subr.mxu0 0.0
    %175 = vmatpush1.msra.mxu0 0.0
    %176 = vmatprep.subr.mxu0 0.0
    %177 = vmatpush1.msra.mxu0 0.0
    %178 = vmatprep.subr.mxu0 0.0
    %179 = vmatpush1.msra.mxu0 0.0
    %180 = vmatprep.subr.mxu0 0.0
    %181 = vmatpush1.msra.mxu0 0.0
    %182 = vmatprep.subr.mxu0 0.0
    %183 = vmatpush1.msra.mxu0 0.0
    %184 = vmatprep.subr.mxu0 0.0
    %185 = vmatpush1.msra.mxu0 0.0
    %186 = vmatprep.mubr.f32.mxu0 0.0
    %187 = vmatmul.mubr.f32.gmra.mrb[0].mxu0 %v38
    %v188 = vpop.f32.mrb[0].mxu0
    %v189 = vadd.f32 0.0, %v188
    %v190 = vpop.f32.mrb[0].mxu0
    %191 = vmatprep.mubr.f32.mxu0 0.0
    %192 = vmatmul.mubr.f32.gmra.mrb[0].mxu0 %v41
    %v193 = vpop.f32.mrb[0].mxu0
    %v194 = vadd.f32 0.0, %v193
    %v195 = vpop.f32.mrb[0].mxu0
    %196 = vdwg.mxu0
    %v197 = vld [vmem:[%s3] sm:$0xff]
    %v198 = vld [vmem:[%s3 + $0x8] sm:$0xff]
    %v199 = vld [vmem:[%s3 + $0x10] sm:$0xff]
    %v200 = vld [vmem:[%s3 + $0x18] sm:$0xff]
    %201 = vmatprep.subr.mxu0 0.0
    %202 = vmatpush1.msra.mxu0 %v197
    %203 = vmatprep.subr.mxu0 0.0
    %204 = vmatpush1.msra.mxu0 %v198
    %205 = vmatprep.subr.mxu0 0.0
    %206 = vmatpush1.msra.mxu0 %v199
    %207 = vmatprep.subr.mxu0 0.0
    %208 = vmatpush1.msra.mxu0 %v200
    %209 = vmatprep.subr.mxu0 0.0
    %210 = vmatpush1.msra.mxu0 0.0
    %211 = vmatprep.subr.mxu0 0.0
    %212 = vmatpush1.msra.mxu0 0.0
    %213 = vmatprep.subr.mxu0 0.0
    %214 = vmatpush1.msra.mxu0 0.0
    %215 = vmatprep.subr.mxu0 0.0
    %216 = vmatpush1.msra.mxu0 0.0
    %217 = vmatprep.subr.mxu0 0.0
    %218 = vmatpush1.msra.mxu0 0.0
    %219 = vmatprep.subr.mxu0 0.0
    %220 = vmatpush1.msra.mxu0 0.0
    %221 = vmatprep.subr.mxu0 0.0
    %222 = vmatpush1.msra.mxu0 0.0
    %223 = vmatprep.subr.mxu0 0.0
    %224 = vmatpush1.msra.mxu0 0.0
    %225 = vmatprep.subr.mxu0 0.0
    %226 = vmatpush1.msra.mxu0 0.0
    %227 = vmatprep.subr.mxu0 0.0
    %228 = vmatpush1.msra.mxu0 0.0
    %229 = vmatprep.subr.mxu0 0.0
    %230 = vmatpush1.msra.mxu0 0.0
    %231 = vmatprep.subr.mxu0 0.0
    %232 = vmatpush1.msra.mxu0 0.0
    %233 = vmatprep.subr.mxu0 0.0
    %234 = vmatpush1.msra.mxu0 0.0
    %235 = vmatprep.subr.mxu0 0.0
    %236 = vmatpush1.msra.mxu0 0.0
    %237 = vmatprep.subr.mxu0 0.0
    %238 = vmatpush1.msra.mxu0 0.0
    %239 = vmatprep.subr.mxu0 0.0
    %240 = vmatpush1.msra.mxu0 0.0
    %241 = vmatprep.subr.mxu0 0.0
    %242 = vmatpush1.msra.mxu0 0.0
    %243 = vmatprep.subr.mxu0 0.0
    %244 = vmatpush1.msra.mxu0 0.0
    %245 = vmatprep.subr.mxu0 0.0
    %246 = vmatpush1.msra.mxu0 0.0
    %247 = vmatprep.subr.mxu0 0.0
    %248 = vmatpush1.msra.mxu0 0.0
    %249 = vmatprep.subr.mxu0 0.0
    %250 = vmatpush1.msra.mxu0 0.0
    %251 = vmatprep.subr.mxu0 0.0
    %252 = vmatpush1.msra.mxu0 0.0
    %253 = vmatprep.subr.mxu0 0.0
    %254 = vmatpush1.msra.mxu0 0.0
    %255 = vmatprep.subr.mxu0 0.0
    %256 = vmatpush1.msra.mxu0 0.0
    %257 = vmatprep.subr.mxu0 0.0
    %258 = vmatpush1.msra.mxu0 0.0
    %259 = vmatprep.subr.mxu0 0.0
    %260 = vmatpush1.msra.mxu0 0.0
    %261 = vmatprep.subr.mxu0 0.0
    %262 = vmatpush1.msra.mxu0 0.0
    %263 = vmatprep.subr.mxu0 0.0
    %264 = vmatpush1.msra.mxu0 0.0
    %265 = vmatprep.mubr.f32.mxu0 0.0
    %266 = vmatmul.mubr.f32.gmra.mrb[0].mxu0 %v38
    %v267 = vpop.f32.mrb[0].mxu0
    %v268 = vadd.f32 0.0, %v267
    %v269 = vpop.f32.mrb[0].mxu0
    %270 = vmatprep.mubr.f32.mxu0 0.0
    %271 = vmatmul.mubr.f32.gmra.mrb[0].mxu0 %v41
    %v272 = vpop.f32.mrb[0].mxu0
    %v273 = vadd.f32 0.0, %v272
    %v274 = vpop.f32.mrb[0].mxu0
    %275 = vdwg.mxu0
    %v276 = vld [vmem:[%s6] sm:$0xff]
    %v277 = vld [vmem:[%s6 + $0x8] sm:$0xff]
    %v278 = vld [vmem:[%s6 + $0x10] sm:$0xff]
    %v279 = vld [vmem:[%s6 + $0x18] sm:$0xff]
    %v280 = vld [vmem:[%s6 + $0x20] sm:$0xff]
    %v281 = vld [vmem:[%s6 + $0x28] sm:$0xff]
    %v282 = vld [vmem:[%s6 + $0x30] sm:$0xff]
    %v283 = vld [vmem:[%s6 + $0x38] sm:$0xff]
    %v284 = vld [vmem:[%s6 + $0x40] sm:$0xff]
    %v285 = vld [vmem:[%s6 + $0x48] sm:$0xff]
    %v286 = vld [vmem:[%s6 + $0x50] sm:$0xff]
    %v287 = vld [vmem:[%s6 + $0x58] sm:$0xff]
    %v288 = vld [vmem:[%s6 + $0x60] sm:$0xff]
    %v289 = vld [vmem:[%s6 + $0x68] sm:$0xff]
    %v290 = vld [vmem:[%s6 + $0x70] sm:$0xff]
    %v291 = vld [vmem:[%s6 + $0x78] sm:$0xff]
    %v292 = vmul.f32 %v189, %v276
    %v293 = vmul.f32 %v194, %v277
    %v294 = vmul.f32 %v189, %v278
    %v295 = vmul.f32 %v194, %v279
    %v296 = vmul.f32 %v189, %v280
    %v297 = vmul.f32 %v194, %v281
    %v298 = vmul.f32 %v189, %v282
    %v299 = vmul.f32 %v194, %v283
    %v300 = vmul.f32 %v189, %v284
    %v301 = vmul.f32 %v194, %v285
    %v302 = vmul.f32 %v189, %v286
    %v303 = vmul.f32 %v194, %v287
    %v304 = vmul.f32 %v189, %v288
    %v305 = vmul.f32 %v194, %v289
    %v306 = vmul.f32 %v189, %v290
    %v307 = vmul.f32 %v194, %v291
    %v308 = vmul.f32 %v268, %v276
    %v309 = vmul.f32 %v273, %v277
    %v310 = vmul.f32 %v268, %v278
    %v311 = vmul.f32 %v273, %v279
    %v312 = vmul.f32 %v268, %v280
    %v313 = vmul.f32 %v273, %v281
    %v314 = vmul.f32 %v268, %v282
    %v315 = vmul.f32 %v273, %v283
    %v316 = vmul.f32 %v268, %v284
    %v317 = vmul.f32 %v273, %v285
    %v318 = vmul.f32 %v268, %v286
    %v319 = vmul.f32 %v273, %v287
    %v320 = vmul.f32 %v268, %v288
    %v321 = vmul.f32 %v273, %v289
    %v322 = vmul.f32 %v268, %v290
    %v323 = vmul.f32 %v273, %v291
    %v324 = vld [vmem:[%s7] sm:$0xff]
    %v325 = vld [vmem:[%s7 + $0x8] sm:$0xff]
    %v327 = vsel %vm36, %v110, 0
    %v330 = vsel %vm36, %v115, 0
    %v333 = vsel %vm36, %v292, 0
    %v336 = vsel %vm36, %v293, 0
    %v339 = vsel %vm36, %v294, 0
    %v342 = vsel %vm36, %v295, 0
    %v345 = vsel %vm36, %v296, 0
    %v348 = vsel %vm36, %v297, 0
    %v351 = vsel %vm36, %v298, 0
    %v354 = vsel %vm36, %v299, 0
    %v357 = vsel %vm36, %v300, 0
    %v360 = vsel %vm36, %v301, 0
    %v363 = vsel %vm36, %v302, 0
    %v366 = vsel %vm36, %v303, 0
    %v369 = vsel %vm36, %v304, 0
    %v372 = vsel %vm36, %v305, 0
    %v375 = vsel %vm36, %v306, 0
    %v378 = vsel %vm36, %v307, 0
    %380 = vmatprep.subr.mxu0 0.0
    %381 = vmatpush1.xpose.msra.mxu0 %v333
    %382 = vmatprep.subr.mxu0 0.0
    %383 = vmatpush1.xpose.msra.mxu0 %v336
    %384 = vmatprep.subr.mxu0 0.0
    %385 = vmatpush1.xpose.msra.mxu0 %v339
    %386 = vmatprep.subr.mxu0 0.0
    %387 = vmatpush1.xpose.msra.mxu0 %v342
    %388 = vmatprep.subr.mxu0 0.0
    %389 = vmatpush1.xpose.msra.mxu0 %v345
    %390 = vmatprep.subr.mxu0 0.0
    %391 = vmatpush1.xpose.msra.mxu0 %v348
    %392 = vmatprep.subr.mxu0 0.0
    %393 = vmatpush1.xpose.msra.mxu0 %v351
    %394 = vmatprep.subr.mxu0 0.0
    %395 = vmatpush1.xpose.msra.mxu0 %v354
    %396 = vmatprep.subr.mxu0 0.0
    %397 = vmatpush1.xpose.msra.mxu0 %v357
    %398 = vmatprep.subr.mxu0 0.0
    %399 = vmatpush1.xpose.msra.mxu0 %v360
    %400 = vmatprep.subr.mxu0 0.0
    %401 = vmatpush1.xpose.msra.mxu0 %v363
    %402 = vmatprep.subr.mxu0 0.0
    %403 = vmatpush1.xpose.msra.mxu0 %v366
    %404 = vmatprep.subr.mxu0 0.0
    %405 = vmatpush1.xpose.msra.mxu0 %v369
    %406 = vmatprep.subr.mxu0 0.0
    %407 = vmatpush1.xpose.msra.mxu0 %v372
    %408 = vmatprep.subr.mxu0 0.0
    %409 = vmatpush1.xpose.msra.mxu0 %v375
    %410 = vmatprep.subr.mxu0 0.0
    %411 = vmatpush1.xpose.msra.mxu0 %v378
    %412 = vmatprep.subr.mxu0 0.0
    %413 = vmatpush1.xpose.msra.mxu0 0.0
    %414 = vmatprep.subr.mxu0 0.0
    %415 = vmatpush1.xpose.msra.mxu0 0.0
    %416 = vmatprep.subr.mxu0 0.0
    %417 = vmatpush1.xpose.msra.mxu0 0.0
    %418 = vmatprep.subr.mxu0 0.0
    %419 = vmatpush1.xpose.msra.mxu0 0.0
    %420 = vmatprep.subr.mxu0 0.0
    %421 = vmatpush1.xpose.msra.mxu0 0.0
    %422 = vmatprep.subr.mxu0 0.0
    %423 = vmatpush1.xpose.msra.mxu0 0.0
    %424 = vmatprep.subr.mxu0 0.0
    %425 = vmatpush1.xpose.msra.mxu0 0.0
    %426 = vmatprep.subr.mxu0 0.0
    %427 = vmatpush1.xpose.msra.mxu0 0.0
    %428 = vmatprep.subr.mxu0 0.0
    %429 = vmatpush1.xpose.msra.mxu0 0.0
    %430 = vmatprep.subr.mxu0 0.0
    %431 = vmatpush1.xpose.msra.mxu0 0.0
    %432 = vmatprep.subr.mxu0 0.0
    %433 = vmatpush1.xpose.msra.mxu0 0.0
    %434 = vmatprep.subr.mxu0 0.0
    %435 = vmatpush1.xpose.msra.mxu0 0.0
    %436 = vmatprep.subr.mxu0 0.0
    %437 = vmatpush1.xpose.msra.mxu0 0.0
    %438 = vmatprep.subr.mxu0 0.0
    %439 = vmatpush1.xpose.msra.mxu0 0.0
    %440 = vmatprep.subr.mxu0 0.0
    %441 = vmatpush1.xpose.msra.mxu0 0.0
    %442 = vmatprep.subr.mxu0 0.0
    %443 = vmatpush1.xpose.msra.mxu0 0.0
    %444 = vmatprep.mubr.f32.mxu0 0.0
    %445 = vmatmul.mubr.f32.gmra.mrb[0].mxu0 %v327
    %v446 = vpop.f32.mrb[0].mxu0
    %v447 = vadd.f32 %v324, %v446
    %v448 = vpop.f32.mrb[0].mxu0
    %449 = vmatprep.mubr.f32.mxu0 0.0
    %450 = vmatmul.mubr.f32.gmra.mrb[0].mxu0 %v330
    %v451 = vpop.f32.mrb[0].mxu0
    %v452 = vadd.f32 %v325, %v451
    %v453 = vpop.f32.mrb[0].mxu0
    %454 = vdwg.mxu0
    %455 = vmax.xlane.f32.xlu0 %v447
    %v456 = vpop.xlane.xlu0 %455
    %457 = vmax.xlane.f32.xlu0 %v452
    %v458 = vpop.xlane.xlu0 %457
    %v459 = vsub.f32 %v447, %v456
    %v460 = vsub.f32 %v452, %v458
    %v461 = vmul.f32 %v459, 1.442695
    %v462 = vpow.pop %v461
    %v463 = vmul.f32 %v460, 1.442695
    %v464 = vpow.pop %v463
    %465 = vmatprep.subr.mxu0 0.0
    %466 = vmatpush1.msra.mxu0 %v308
    %467 = vmatprep.subr.mxu0 0.0
    %468 = vmatpush1.msra.mxu0 %v309
    %469 = vmatprep.subr.mxu0 0.0
    %470 = vmatpush1.msra.mxu0 %v310
    %471 = vmatprep.subr.mxu0 0.0
    %472 = vmatpush1.msra.mxu0 %v311
    %473 = vmatprep.subr.mxu0 0.0
    %474 = vmatpush1.msra.mxu0 %v312
    %475 = vmatprep.subr.mxu0 0.0
    %476 = vmatpush1.msra.mxu0 %v313
    %477 = vmatprep.subr.mxu0 0.0
    %478 = vmatpush1.msra.mxu0 %v314
    %479 = vmatprep.subr.mxu0 0.0
    %480 = vmatpush1.msra.mxu0 %v315
    %481 = vmatprep.subr.mxu0 0.0
    %482 = vmatpush1.msra.mxu0 %v316
    %483 = vmatprep.subr.mxu0 0.0
    %484 = vmatpush1.msra.mxu0 %v317
    %485 = vmatprep.subr.mxu0 0.0
    %486 = vmatpush1.msra.mxu0 %v318
    %487 = vmatprep.subr.mxu0 0.0
    %488 = vmatpush1.msra.mxu0 %v319
    %489 = vmatprep.subr.mxu0 0.0
    %490 = vmatpush1.msra.mxu0 %v320
    %491 = vmatprep.subr.mxu0 0.0
    %492 = vmatpush1.msra.mxu0 %v321
    %493 = vmatprep.subr.mxu0 0.0
    %494 = vmatpush1.msra.mxu0 %v322
    %495 = vmatprep.subr.mxu0 0.0
    %496 = vmatpush1.msra.mxu0 %v323
    %497 = vmatprep.subr.mxu0 0.0
    %498 = vmatpush1.msra.mxu0 0.0
    %499 = vmatprep.subr.mxu0 0.0
    %500 = vmatpush1.msra.mxu0 0.0
    %501 = vmatprep.subr.mxu0 0.0
    %502 = vmatpush1.msra.mxu0 0.0
    %503 = vmatprep.subr.mxu0 0.0
    %504 = vmatpush1.msra.mxu0 0.0
    %505 = vmatprep.subr.mxu0 0.0
    %506 = vmatpush1.msra.mxu0 0.0
    %507 = vmatprep.subr.mxu0 0.0
    %508 = vmatpush1.msra.mxu0 0.0
    %509 = vmatprep.subr.mxu0 0.0
    %510 = vmatpush1.msra.mxu0 0.0
    %511 = vmatprep.subr.mxu0 0.0
    %512 = vmatpush1.msra.mxu0 0.0
    %513 = vmatprep.subr.mxu0 0.0
    %514 = vmatpush1.msra.mxu0 0.0
    %515 = vmatprep.subr.mxu0 0.0
    %516 = vmatpush1.msra.mxu0 0.0
    %517 = vmatprep.subr.mxu0 0.0
    %518 = vmatpush1.msra.mxu0 0.0
    %519 = vmatprep.subr.mxu0 0.0
    %520 = vmatpush1.msra.mxu0 0.0
    %521 = vmatprep.subr.mxu0 0.0
    %522 = vmatpush1.msra.mxu0 0.0
    %523 = vmatprep.subr.mxu0 0.0
    %524 = vmatpush1.msra.mxu0 0.0
    %525 = vmatprep.subr.mxu0 0.0
    %526 = vmatpush1.msra.mxu0 0.0
    %527 = vmatprep.subr.mxu0 0.0
    %528 = vmatpush1.msra.mxu0 0.0
    %529 = vmatprep.mubr.f32.mxu0 0.0
    %530 = vmatmul.mubr.f32.gmra.mrb[0].mxu0 %v462
    %v531 = vpop.f32.mrb[0].mxu0
    %v532 = vadd.f32 0.0, %v531
    %v533 = vpop.f32.mrb[0].mxu0
    %534 = vmatprep.mubr.f32.mxu0 0.0
    %535 = vmatmul.mubr.f32.gmra.mrb[0].mxu0 %v464
    %v536 = vpop.f32.mrb[0].mxu0
    %v537 = vadd.f32 0.0, %v536
    %v538 = vpop.f32.mrb[0].mxu0
    %539 = vdwg.mxu0
    %540 = vmatprep.subr.mxu0 0.0
    %541 = vmatpush1.msra.mxu0 %v276
    %542 = vmatprep.subr.mxu0 0.0
    %543 = vmatpush1.msra.mxu0 %v277
    %544 = vmatprep.subr.mxu0 0.0
    %545 = vmatpush1.msra.mxu0 %v278
    %546 = vmatprep.subr.mxu0 0.0
    %547 = vmatpush1.msra.mxu0 %v279
    %548 = vmatprep.subr.mxu0 0.0
    %549 = vmatpush1.msra.mxu0 %v280
    %550 = vmatprep.subr.mxu0 0.0
    %551 = vmatpush1.msra.mxu0 %v281
    %552 = vmatprep.subr.mxu0 0.0
    %553 = vmatpush1.msra.mxu0 %v282
    %554 = vmatprep.subr.mxu0 0.0
    %555 = vmatpush1.msra.mxu0 %v283
    %556 = vmatprep.subr.mxu0 0.0
    %557 = vmatpush1.msra.mxu0 %v284
    %558 = vmatprep.subr.mxu0 0.0
    %559 = vmatpush1.msra.mxu0 %v285
    %560 = vmatprep.subr.mxu0 0.0
    %561 = vmatpush1.msra.mxu0 %v286
    %562 = vmatprep.subr.mxu0 0.0
    %563 = vmatpush1.msra.mxu0 %v287
    %564 = vmatprep.subr.mxu0 0.0
    %565 = vmatpush1.msra.mxu0 %v288
    %566 = vmatprep.subr.mxu0 0.0
    %567 = vmatpush1.msra.mxu0 %v289
    %568 = vmatprep.subr.mxu0 0.0
    %569 = vmatpush1.msra.mxu0 %v290
    %570 = vmatprep.subr.mxu0 0.0
    %571 = vmatpush1.msra.mxu0 %v291
    %572 = vmatprep.subr.mxu0 0.0
    %573 = vmatpush1.msra.mxu0 0.0
    %574 = vmatprep.subr.mxu0 0.0
    %575 = vmatpush1.msra.mxu0 0.0
    %576 = vmatprep.subr.mxu0 0.0
    %577 = vmatpush1.msra.mxu0 0.0
    %578 = vmatprep.subr.mxu0 0.0
    %579 = vmatpush1.msra.mxu0 0.0
    %580 = vmatprep.subr.mxu0 0.0
    %581 = vmatpush1.msra.mxu0 0.0
    %582 = vmatprep.subr.mxu0 0.0
    %583 = vmatpush1.msra.mxu0 0.0
    %584 = vmatprep.subr.mxu0 0.0
    %585 = vmatpush1.msra.mxu0 0.0
    %586 = vmatprep.subr.mxu0 0.0
    %587 = vmatpush1.msra.mxu0 0.0
    %588 = vmatprep.subr.mxu0 0.0
    %589 = vmatpush1.msra.mxu0 0.0
    %590 = vmatprep.subr.mxu0 0.0
    %591 = vmatpush1.msra.mxu0 0.0
    %592 = vmatprep.subr.mxu0 0.0
    %593 = vmatpush1.msra.mxu0 0.0
    %594 = vmatprep.subr.mxu0 0.0
    %595 = vmatpush1.msra.mxu0 0.0
    %596 = vmatprep.subr.mxu0 0.0
    %597 = vmatpush1.msra.mxu0 0.0
    %598 = vmatprep.subr.mxu0 0.0
    %599 = vmatpush1.msra.mxu0 0.0
    %600 = vmatprep.subr.mxu0 0.0
    %601 = vmatpush1.msra.mxu0 0.0
    %602 = vmatprep.subr.mxu0 0.0
    %603 = vmatpush1.msra.mxu0 0.0
    %604 = vmatprep.mubr.f32.mxu0 0.0
    %605 = vmatmul.mubr.f32.gmra.mrb[0].mxu0 %v462
    %v606 = vpop.f32.mrb[0].mxu0
    %v607 = vadd.f32 0.0, %v606
    %v608 = vpop.f32.mrb[0].mxu0
    %609 = vmatprep.mubr.f32.mxu0 0.0
    %610 = vmatmul.mubr.f32.gmra.mrb[0].mxu0 %v464
    %v611 = vpop.f32.mrb[0].mxu0
    %v612 = vadd.f32 0.0, %v611
    %v613 = vpop.f32.mrb[0].mxu0
    %614 = vdwg.mxu0
    %v615 = vmax.f32 %v607, 1e-30
    %v616 = vmax.f32 %v612, 1e-30
    %v617 = vrcp.pop %v615
    %v618 = vmul.f32 %v532, %v617
    %v619 = vrcp.pop %v616
    %v620 = vmul.f32 %v537, %v619
    %v621 = vld [vmem:[%s4] sm:$0xff]
    %v622 = vld [vmem:[%s4 + $0x8] sm:$0xff]
    %v623 = vld [vmem:[%s4 + $0x10] sm:$0xff]
    %v624 = vld [vmem:[%s4 + $0x18] sm:$0xff]
    %v625 = vld [vmem:[%s5] sm:$0x1]
    %v627 = vlaneseq
    %v628 = vshrl.u32 %v627, 7
    %v629 = vsub.s32 0, %v628
    %v630 = vrot.slane %v625, %v629
    %v633 = vsel %vm36, %v618, 0
    %v636 = vsel %vm36, %v620, 0
    %638 = vmatprep.subr.mxu0 0.0
    %639 = vmatpush1.msra.mxu0 %v621
    %640 = vmatprep.subr.mxu0 0.0
    %641 = vmatpush1.msra.mxu0 %v622
    %642 = vmatprep.subr.mxu0 0.0
    %643 = vmatpush1.msra.mxu0 %v623
    %644 = vmatprep.subr.mxu0 0.0
    %645 = vmatpush1.msra.mxu0 %v624
    %646 = vmatprep.subr.mxu0 0.0
    %647 = vmatpush1.msra.mxu0 0.0
    %648 = vmatprep.subr.mxu0 0.0
    %649 = vmatpush1.msra.mxu0 0.0
    %650 = vmatprep.subr.mxu0 0.0
    %651 = vmatpush1.msra.mxu0 0.0
    %652 = vmatprep.subr.mxu0 0.0
    %653 = vmatpush1.msra.mxu0 0.0
    %654 = vmatprep.subr.mxu0 0.0
    %655 = vmatpush1.msra.mxu0 0.0
    %656 = vmatprep.subr.mxu0 0.0
    %657 = vmatpush1.msra.mxu0 0.0
    %658 = vmatprep.subr.mxu0 0.0
    %659 = vmatpush1.msra.mxu0 0.0
    %660 = vmatprep.subr.mxu0 0.0
    %661 = vmatpush1.msra.mxu0 0.0
    %662 = vmatprep.subr.mxu0 0.0
    %663 = vmatpush1.msra.mxu0 0.0
    %664 = vmatprep.subr.mxu0 0.0
    %665 = vmatpush1.msra.mxu0 0.0
    %666 = vmatprep.subr.mxu0 0.0
    %667 = vmatpush1.msra.mxu0 0.0
    %668 = vmatprep.subr.mxu0 0.0
    %669 = vmatpush1.msra.mxu0 0.0
    %670 = vmatprep.subr.mxu0 0.0
    %671 = vmatpush1.msra.mxu0 0.0
    %672 = vmatprep.subr.mxu0 0.0
    %673 = vmatpush1.msra.mxu0 0.0
    %674 = vmatprep.subr.mxu0 0.0
    %675 = vmatpush1.msra.mxu0 0.0
    %676 = vmatprep.subr.mxu0 0.0
    %677 = vmatpush1.msra.mxu0 0.0
    %678 = vmatprep.subr.mxu0 0.0
    %679 = vmatpush1.msra.mxu0 0.0
    %680 = vmatprep.subr.mxu0 0.0
    %681 = vmatpush1.msra.mxu0 0.0
    %682 = vmatprep.subr.mxu0 0.0
    %683 = vmatpush1.msra.mxu0 0.0
    %684 = vmatprep.subr.mxu0 0.0
    %685 = vmatpush1.msra.mxu0 0.0
    %686 = vmatprep.subr.mxu0 0.0
    %687 = vmatpush1.msra.mxu0 0.0
    %688 = vmatprep.subr.mxu0 0.0
    %689 = vmatpush1.msra.mxu0 0.0
    %690 = vmatprep.subr.mxu0 0.0
    %691 = vmatpush1.msra.mxu0 0.0
    %692 = vmatprep.subr.mxu0 0.0
    %693 = vmatpush1.msra.mxu0 0.0
    %694 = vmatprep.subr.mxu0 0.0
    %695 = vmatpush1.msra.mxu0 0.0
    %696 = vmatprep.subr.mxu0 0.0
    %697 = vmatpush1.msra.mxu0 0.0
    %698 = vmatprep.subr.mxu0 0.0
    %699 = vmatpush1.msra.mxu0 0.0
    %700 = vmatprep.subr.mxu0 0.0
    %701 = vmatpush1.msra.mxu0 0.0
    %702 = vmatprep.mubr.f32.mxu0 0.0
    %703 = vmatmul.mubr.f32.gmra.mrb[0].mxu0 %v633
    %v704 = vpop.f32.mrb[0].mxu0
    %v705 = vadd.f32 %v630, %v704
    %v706 = vpop.f32.mrb[0].mxu0
    %707 = vmatprep.mubr.f32.mxu0 0.0
    %708 = vmatmul.mubr.f32.gmra.mrb[0].mxu0 %v636
    %v709 = vpop.f32.mrb[0].mxu0
    %v710 = vadd.f32 %v630, %v709
    %v711 = vpop.f32.mrb[0].mxu0
    %712 = vdwg.mxu0
    %713 = vst.msk [vmem:[#allocation2] sm:$0xff] %vm36, %v705
    %714 = vst.msk [vmem:[#allocation2 + $0x8] sm:$0xff] %vm36, %v710
    // Predicated region
    $region34: #{tpu_custom_call.1} parent=1 // pred_check
      _
    $region35: #{tpu_custom_call.1} parent=1 // pred_check_branch
      %716 = sbr.rel (0) target = $region37
    $region36: #{tpu_custom_call.1} parent=1 // pred_region
      %s718 = ssub.s32 256, 256
      %719 = vsyncadd [#allocation3], %s718
      %s720 = sshll.u32 [#allocation2], 4
      %s721 = int_to_ptr.vmem [resolvable:$true] %s720
      %726 = dma.vmem_to_hbm [thread:$0]  %s721, 256, %s8, [#allocation3], 128, 128, 8
    $region37: #{tpu_custom_call.1} parent=1 // pred_fallthru
      _
    // Predicated region
    $region38: #{tpu_custom_call.1} parent=1 // pred_check
      _
    $region39: #{tpu_custom_call.1} parent=1 // pred_check_branch
      %728 = sbr.rel (0) target = $region41
    $region40: #{tpu_custom_call.1} parent=1 // pred_region
      %729 = dma.done [#allocation3], 256
    $region41: #{tpu_custom_call.1} parent=1 // pred_fallthru
      _
    %730 = vsyncpa [#allocation3], 1

</llo_original>
